<compile_context>
chip_gen: v6e
topology: v6e:2x2x1
jax: 0.10.0
libtpu: 0.0.40
codegen_flags: <defaults>
</compile_context>

<pallas_src>
import jax
import jax.numpy as jnp
from jax import lax
from jax.experimental import pallas as pl
from jax.experimental.pallas import tpu as pltpu


LANES = 128          # vreg lane width
CHUNK_ROWS = 16      # register-resident accumulator chunk (16x128 f32 = 2 vregs/array)
MAX_TILE_ROWS = 512  # 512x128 f32 = 256 KiB per tile; far under VMEM on all generations


# ----------------------------------------------------------------------------
# Plain-JAX parameter setup (mirrors the PyTorch helpers)
# ----------------------------------------------------------------------------
def get_cheb_nodes(n):
    """Chebyshev points of the second kind, cos(pi * linspace(0, 1, n))."""
    i = jnp.linspace(0.0, 1.0, n, dtype=jnp.float32)
    return jnp.cos(jnp.pi * i)


def compute_barycentric_weights(nodes, pole_real=None, pole_imag=None):
    """JAX port of compute_barycentric_weights (vectorized, same math)."""
    n = nodes.shape[0]
    diffs = nodes[:, None] - nodes[None, :]                     # (n, n)
    eye = jnp.eye(n, dtype=bool)
    safe = jnp.where(eye, 1.0, diffs)
    log_weights = -jnp.sum(jnp.where(eye, 0.0, jnp.log(jnp.abs(safe))), axis=1)
    neg_count = jnp.sum(((diffs < 0) & (~eye)).astype(jnp.int32), axis=1)
    signs = jnp.where(neg_count % 2 == 0, 1.0, -1.0).astype(nodes.dtype)
    if pole_real is not None and pole_imag is not None:
        # each conjugate pair contributes log(|x - (r + i*j)|) twice
        pole_diff = jnp.sqrt(
            (nodes[:, None] - pole_real[None, :]) ** 2 + pole_imag[None, :] ** 2
        )                                                       # (n, P)
        log_weights = log_weights + 2.0 * jnp.sum(jnp.log(pole_diff), axis=1)
    log_weights = log_weights - jnp.max(log_weights)
    weights = signs * jnp.exp(log_weights)
    weights = weights / jnp.abs(weights[0])
    return weights


# ----------------------------------------------------------------------------
# Pallas kernel: barycentric evaluation of one (tile_rows, 128) tile of points
# ----------------------------------------------------------------------------
def _make_bary_kernel(chunk_rows, node_unroll):
    def kernel(nodes_ref, values_ref, vw_ref, w_ref, x_ref, out_ref):
        n_nodes = nodes_ref.shape[0]
        n_chunks = x_ref.shape[0] // chunk_rows

        # Walk the big VMEM tile in small register-resident row chunks so the
        # 4 loop-carried accumulators stay in vregs across the node loop.
        @pl.loop(0, n_chunks)
        def _(c):
            r0 = pl.multiple_of(c * chunk_rows, chunk_rows)
            x = x_ref[pl.ds(r0, chunk_rows), :]                 # (CH, 128) f32
            zeros = jnp.zeros_like(x)
            init = (
                zeros,                                          # num accumulator
                zeros,                                          # den accumulator
                jnp.zeros(x.shape, dtype=jnp.bool_),            # exact-hit flag
                zeros,                                          # value at hit node
            )

            def body(n, carry):
                num, den, hit, hit_val = carry
                xn = nodes_ref[n]                               # SMEM scalar loads
                vn = values_ref[n]
                vwn = vw_ref[n]
                wn = w_ref[n]

                d = x - xn
                is_hit = jnp.abs(d) < 1e-14
                r = pl.reciprocal(d, approx=True)               # EUP
                r = r * (2.0 - d * r)                           # one Newton step (VPU)
                # true select: discards any inf/NaN produced at exact hits
                r = jnp.where(is_hit, 0.0, r)

                num = num + vwn * r
                den = den + wn * r
                hit_val = jnp.where(is_hit, vn, hit_val)
                hit = jnp.logical_or(hit, is_hit)
                return num, den, hit, hit_val

            num, den, hit, hit_val = lax.fori_loop(
                0, n_nodes, body, init, unroll=node_unroll)
            # exact node hit -> interpolant equals the nodal value (as reference)
            out_ref[pl.ds(r0, chunk_rows), :] = jnp.where(hit, hit_val, num / den)

    return kernel


def _num_tensorcores():
    """Best-effort TensorCore-per-chip count (2 on v7x, 1 on v5e/v6e)."""
    try:
        info = pltpu.get_tpu_info()
        for attr in ("num_cores", "core_count", "num_tensorcores", "tensorcore_count"):
            v = getattr(info, attr, None)
            if isinstance(v, int) and v > 0:
                return v
    except Exception:
        pass
    try:
        kind = jax.devices()[0].device_kind.lower()
        if "v7" in kind:
            return 2
    except Exception:
        pass
    return 1


def rational_interpolate(x_eval, nodes, values, weights):
    """Evaluate the rational interpolant at x_eval (shape (M,)) -> (M,)."""
    x_eval = x_eval.astype(jnp.float32)
    m = x_eval.shape[0]

    # --- tiling: biggest lane-dense tiles; even tile count only on multi-TC chips
    num_cores = _num_tensorcores()
    rows = pl.cdiv(m, LANES)
    rows = pl.cdiv(rows, CHUNK_ROWS) * CHUNK_ROWS
    num_tiles = pl.cdiv(rows, MAX_TILE_ROWS)
    if num_cores > 1:
        num_tiles = pl.cdiv(num_tiles, num_cores) * num_cores   # balance both TCs (v7x)
    tile_rows = pl.cdiv(rows, num_tiles)
    tile_rows = pl.cdiv(tile_rows, CHUNK_ROWS) * CHUNK_ROWS
    rows_padded = num_tiles * tile_rows

    # pad eval points with a value safely away from the nodes (sliced off later)
    m_pad = rows_padded * LANES
    x_p = jnp.pad(x_eval, (0, m_pad - m), constant_values=2.0)
    x_p = x_p.reshape(rows_padded, LANES)

    nodes_s = nodes.astype(jnp.float32)
    values_s = values.astype(jnp.float32)
    w_s = weights.astype(jnp.float32)
    vw_s = values_s * w_s                                        # precomputed values*weights

    n_nodes = int(nodes_s.shape[0])
    node_unroll = n_nodes if n_nodes <= 32 else 8                # bounded unroll for large N
    kernel = _make_bary_kernel(CHUNK_ROWS, node_unroll)

    smem_spec = pl.BlockSpec(memory_space=pltpu.MemorySpace.SMEM)

    out = pl.pallas_call(
        kernel,
        out_shape=jax.ShapeDtypeStruct((rows_padded, LANES), jnp.float32),
        grid_spec=pltpu.PrefetchScalarGridSpec(
            num_scalar_prefetch=0,
            grid=(num_tiles,),
            in_specs=[
                smem_spec,                                       # nodes          (N,)
                smem_spec,                                       # values         (N,)
                smem_spec,                                       # values*weights (N,)
                smem_spec,                                       # weights        (N,)
                pl.BlockSpec((tile_rows, LANES), lambda i: (i, 0)),  # x tile
            ],
            out_specs=pl.BlockSpec((tile_rows, LANES), lambda i: (i, 0)),
        ),
        compiler_params=pltpu.CompilerParams(
            dimension_semantics=("parallel",),
        ),
    )(nodes_s, values_s, vw_s, w_s, x_p)
    return out.reshape(-1)[:m]


# ----------------------------------------------------------------------------
# Model wrapper (deterministic synthetic parameters)
# ----------------------------------------------------------------------------
class RationalInterpolationModelJAX:
    def __init__(self, num_points, num_poles=2, key=None):
        assert num_poles % 2 == 0, "num_poles must be even for conjugate pairs"
        if key is None:
            key = jax.random.PRNGKey(0)
        k_pole, k_vals = jax.random.split(key)
        num_pairs = num_poles // 2
        self.nodes = get_cheb_nodes(num_points)                        # (N,)
        self.pole_real = jax.random.uniform(
            k_pole, (num_pairs,), minval=-1.0, maxval=1.0, dtype=jnp.float32
        )
        self.pole_imag = 0.1 * jnp.ones((num_pairs,), dtype=jnp.float32)
        # the torch module inits values to zeros; use deterministic random
        # values so the forward pass is non-trivial to check
        self.values = 0.5 * jax.random.normal(k_vals, (num_points,), dtype=jnp.float32)
        self.weights = compute_barycentric_weights(
            self.nodes, self.pole_real, self.pole_imag
        )

    def __call__(self, x_eval):
        # forward(): barycentric weights are re-derived from the current pole
        # parameters (as in torch _interpolate), then the Pallas kernel
        # evaluates the rational interpolant.
        weights = compute_barycentric_weights(
            self.nodes, self.pole_real, self.pole_imag
        )
        return rational_interpolate(x_eval, self.nodes, self.values, weights)


# ----------------------------------------------------------------------------
def _reference_forward(x_eval, nodes, values, weights):
    """Pure-jnp reference mirroring torch _interpolate semantics."""
    d = x_eval[None, :] - nodes[:, None]
    small = jnp.abs(d) < 1e-14
    col_hit = jnp.any(small, axis=0)
    inv = jnp.where(col_hit[None, :], jnp.zeros_like(d), 1.0 / d)
    inv = jnp.where(small, jnp.ones_like(inv), inv)
    num = jnp.einsum("n,nm,n->m", values, inv, weights)
    den = jnp.einsum("nm,n->m", inv, weights)
    return num / den


if __name__ == "__main__":
    num_points = 16     # Chebyshev nodes
    num_poles = 2       # one conjugate pole pair
    n_eval = 1000       # matches the spec's x_eval; exercises padding + exact hits at +/-1

    model = RationalInterpolationModelJAX(num_points, num_poles,
                                          key=jax.random.PRNGKey(0))
    x_eval = jnp.linspace(-1.0, 1.0, n_eval, dtype=jnp.float32)

    out = model(x_eval)
    out = jax.block_until_ready(out)

    weights = compute_barycentric_weights(model.nodes, model.pole_real, model.pole_imag)
    ref = _reference_forward(x_eval, model.nodes, model.values, weights)

    assert out.shape == (n_eval,)
    assert bool(jnp.all(jnp.isfinite(out)))
    assert bool(jnp.allclose(out, ref, rtol=1e-4, atol=1e-5)), "mismatch vs reference"

    print("KERNEL_OK")
</pallas_src>

<mosaic_0001>
module attributes {stable_mosaic.version = 11 : i64} {
  func.func @kernel(%arg0: i32, %arg1: memref<16xf32, #tpu.memory_space<smem>>, %arg2: memref<16xf32, #tpu.memory_space<smem>>, %arg3: memref<16xf32, #tpu.memory_space<smem>>, %arg4: memref<16xf32, #tpu.memory_space<smem>>, %arg5: memref<16x128xf32, #tpu.memory_space<vmem>>, %arg6: memref<16x128xf32, #tpu.memory_space<vmem>>) attributes {dimension_semantics = [#tpu.dimension_semantics<parallel>], iteration_bounds = array<i64: 1>, scalar_prefetch = 0 : i64, scratch_operands = 0 : i64, tpu.core_type = #tpu.core_type<tc>, window_params = [{transform_indices = @transform_0, window_bounds = array<i64: 16>}, {transform_indices = @transform_1, window_bounds = array<i64: 16>}, {transform_indices = @transform_2, window_bounds = array<i64: 16>}, {transform_indices = @transform_3, window_bounds = array<i64: 16>}, {transform_indices = @transform_4, window_bounds = array<i64: 16, 128>}, {transform_indices = @transform_5, window_bounds = array<i64: 16, 128>}]} {
    %c0_i32 = arith.constant 0 : i32
    %c1_i32 = arith.constant 1 : i32
    %0 = arith.muli %c0_i32, %c1_i32 : i32
    %c0_i32_0 = arith.constant 0 : i32
    %1 = arith.addi %c0_i32_0, %0 : i32
    %c16_i32 = arith.constant 16 : i32
    %2 = arith.muli %1, %c16_i32 : i32
    %3 = tpu.assume_multiple %2, 16 : i32
    %4 = arith.index_cast %3 : i32 to index
    %c0 = arith.constant 0 : index
    %5 = vector.load %arg5[%4, %c0] : memref<16x128xf32, #tpu.memory_space<vmem>>, vector<16x128xf32>
    %cst = arith.constant 0.000000e+00 : f32
    %6 = vector.broadcast %cst : f32 to vector<16x128xf32>
    %false = arith.constant false
    %7 = vector.broadcast %false : i1 to vector<16x128xi1>
    %c0_i32_1 = arith.constant 0 : i32
    %8 = arith.index_cast %c0_i32_1 : i32 to index
    %9 = memref.load %arg1[%8] : memref<16xf32, #tpu.memory_space<smem>>
    %10 = arith.index_cast %c0_i32_1 : i32 to index
    %11 = memref.load %arg2[%10] : memref<16xf32, #tpu.memory_space<smem>>
    %12 = arith.index_cast %c0_i32_1 : i32 to index
    %13 = memref.load %arg3[%12] : memref<16xf32, #tpu.memory_space<smem>>
    %14 = arith.index_cast %c0_i32_1 : i32 to index
    %15 = memref.load %arg4[%14] : memref<16xf32, #tpu.memory_space<smem>>
    %16 = vector.broadcast %9 : f32 to vector<16x128xf32>
    %17 = arith.subf %5, %16 : vector<16x128xf32>
    %18 = math.absf %17 : vector<16x128xf32>
    %cst_2 = arith.constant 9.99999982E-15 : f32
    %19 = vector.broadcast %cst_2 : f32 to vector<16x128xf32>
    %20 = arith.cmpf olt, %18, %19 : vector<16x128xf32>
    %21 = tpu.reciprocal %17 {approx = true} : vector<16x128xf32> -> vector<16x128xf32>
    %22 = arith.mulf %17, %21 : vector<16x128xf32>
    %cst_3 = arith.constant 2.000000e+00 : f32
    %23 = vector.broadcast %cst_3 : f32 to vector<16x128xf32>
    %24 = arith.subf %23, %22 : vector<16x128xf32>
    %25 = arith.mulf %21, %24 : vector<16x128xf32>
    %cst_4 = arith.constant 0.000000e+00 : f32
    %26 = vector.broadcast %cst_4 : f32 to vector<16x128xf32>
    %27 = arith.select %20, %26, %25 : vector<16x128xi1>, vector<16x128xf32>
    %28 = vector.broadcast %13 : f32 to vector<16x128xf32>
    %29 = arith.mulf %28, %27 : vector<16x128xf32>
    %30 = arith.addf %6, %29 : vector<16x128xf32>
    %31 = vector.broadcast %15 : f32 to vector<16x128xf32>
    %32 = arith.mulf %31, %27 : vector<16x128xf32>
    %33 = arith.addf %6, %32 : vector<16x128xf32>
    %34 = vector.broadcast %11 : f32 to vector<16x128xf32>
    %35 = arith.select %20, %34, %6 : vector<16x128xi1>, vector<16x128xf32>
    %36 = arith.ori %7, %20 : vector<16x128xi1>
    %c1_i32_5 = arith.constant 1 : i32
    %37 = arith.index_cast %c1_i32_5 : i32 to index
    %38 = memref.load %arg1[%37] : memref<16xf32, #tpu.memory_space<smem>>
    %39 = arith.index_cast %c1_i32_5 : i32 to index
    %40 = memref.load %arg2[%39] : memref<16xf32, #tpu.memory_space<smem>>
    %41 = arith.index_cast %c1_i32_5 : i32 to index
    %42 = memref.load %arg3[%41] : memref<16xf32, #tpu.memory_space<smem>>
    %43 = arith.index_cast %c1_i32_5 : i32 to index
    %44 = memref.load %arg4[%43] : memref<16xf32, #tpu.memory_space<smem>>
    %45 = vector.broadcast %38 : f32 to vector<16x128xf32>
    %46 = arith.subf %5, %45 : vector<16x128xf32>
    %47 = math.absf %46 : vector<16x128xf32>
    %cst_6 = arith.constant 9.99999982E-15 : f32
    %48 = vector.broadcast %cst_6 : f32 to vector<16x128xf32>
    %49 = arith.cmpf olt, %47, %48 : vector<16x128xf32>
    %50 = tpu.reciprocal %46 {approx = true} : vector<16x128xf32> -> vector<16x128xf32>
    %51 = arith.mulf %46, %50 : vector<16x128xf32>
    %cst_7 = arith.constant 2.000000e+00 : f32
    %52 = vector.broadcast %cst_7 : f32 to vector<16x128xf32>
    %53 = arith.subf %52, %51 : vector<16x128xf32>
    %54 = arith.mulf %50, %53 : vector<16x128xf32>
    %cst_8 = arith.constant 0.000000e+00 : f32
    %55 = vector.broadcast %cst_8 : f32 to vector<16x128xf32>
    %56 = arith.select %49, %55, %54 : vector<16x128xi1>, vector<16x128xf32>
    %57 = vector.broadcast %42 : f32 to vector<16x128xf32>
    %58 = arith.mulf %57, %56 : vector<16x128xf32>
    %59 = arith.addf %30, %58 : vector<16x128xf32>
    %60 = vector.broadcast %44 : f32 to vector<16x128xf32>
    %61 = arith.mulf %60, %56 : vector<16x128xf32>
    %62 = arith.addf %33, %61 : vector<16x128xf32>
    %63 = vector.broadcast %40 : f32 to vector<16x128xf32>
    %64 = arith.select %49, %63, %35 : vector<16x128xi1>, vector<16x128xf32>
    %65 = arith.ori %36, %49 : vector<16x128xi1>
    %c2_i32 = arith.constant 2 : i32
    %66 = arith.index_cast %c2_i32 : i32 to index
    %67 = memref.load %arg1[%66] : memref<16xf32, #tpu.memory_space<smem>>
    %68 = arith.index_cast %c2_i32 : i32 to index
    %69 = memref.load %arg2[%68] : memref<16xf32, #tpu.memory_space<smem>>
    %70 = arith.index_cast %c2_i32 : i32 to index
    %71 = memref.load %arg3[%70] : memref<16xf32, #tpu.memory_space<smem>>
    %72 = arith.index_cast %c2_i32 : i32 to index
    %73 = memref.load %arg4[%72] : memref<16xf32, #tpu.memory_space<smem>>
    %74 = vector.broadcast %67 : f32 to vector<16x128xf32>
    %75 = arith.subf %5, %74 : vector<16x128xf32>
    %76 = math.absf %75 : vector<16x128xf32>
    %cst_9 = arith.constant 9.99999982E-15 : f32
    %77 = vector.broadcast %cst_9 : f32 to vector<16x128xf32>
    %78 = arith.cmpf olt, %76, %77 : vector<16x128xf32>
    %79 = tpu.reciprocal %75 {approx = true} : vector<16x128xf32> -> vector<16x128xf32>
    %80 = arith.mulf %75, %79 : vector<16x128xf32>
    %cst_10 = arith.constant 2.000000e+00 : f32
    %81 = vector.broadcast %cst_10 : f32 to vector<16x128xf32>
    %82 = arith.subf %81, %80 : vector<16x128xf32>
    %83 = arith.mulf %79, %82 : vector<16x128xf32>
    %cst_11 = arith.constant 0.000000e+00 : f32
    %84 = vector.broadcast %cst_11 : f32 to vector<16x128xf32>
    %85 = arith.select %78, %84, %83 : vector<16x128xi1>, vector<16x128xf32>
    %86 = vector.broadcast %71 : f32 to vector<16x128xf32>
    %87 = arith.mulf %86, %85 : vector<16x128xf32>
    %88 = arith.addf %59, %87 : vector<16x128xf32>
    %89 = vector.broadcast %73 : f32 to vector<16x128xf32>
    %90 = arith.mulf %89, %85 : vector<16x128xf32>
    %91 = arith.addf %62, %90 : vector<16x128xf32>
    %92 = vector.broadcast %69 : f32 to vector<16x128xf32>
    %93 = arith.select %78, %92, %64 : vector<16x128xi1>, vector<16x128xf32>
    %94 = arith.ori %65, %78 : vector<16x128xi1>
    %c3_i32 = arith.constant 3 : i32
    %95 = arith.index_cast %c3_i32 : i32 to index
    %96 = memref.load %arg1[%95] : memref<16xf32, #tpu.memory_space<smem>>
    %97 = arith.index_cast %c3_i32 : i32 to index
    %98 = memref.load %arg2[%97] : memref<16xf32, #tpu.memory_space<smem>>
    %99 = arith.index_cast %c3_i32 : i32 to index
    %100 = memref.load %arg3[%99] : memref<16xf32, #tpu.memory_space<smem>>
    %101 = arith.index_cast %c3_i32 : i32 to index
    %102 = memref.load %arg4[%101] : memref<16xf32, #tpu.memory_space<smem>>
    %103 = vector.broadcast %96 : f32 to vector<16x128xf32>
    %104 = arith.subf %5, %103 : vector<16x128xf32>
    %105 = math.absf %104 : vector<16x128xf32>
    %cst_12 = arith.constant 9.99999982E-15 : f32
    %106 = vector.broadcast %cst_12 : f32 to vector<16x128xf32>
    %107 = arith.cmpf olt, %105, %106 : vector<16x128xf32>
    %108 = tpu.reciprocal %104 {approx = true} : vector<16x128xf32> -> vector<16x128xf32>
    %109 = arith.mulf %104, %108 : vector<16x128xf32>
    %cst_13 = arith.constant 2.000000e+00 : f32
    %110 = vector.broadcast %cst_13 : f32 to vector<16x128xf32>
    %111 = arith.subf %110, %109 : vector<16x128xf32>
    %112 = arith.mulf %108, %111 : vector<16x128xf32>
    %cst_14 = arith.constant 0.000000e+00 : f32
    %113 = vector.broadcast %cst_14 : f32 to vector<16x128xf32>
    %114 = arith.select %107, %113, %112 : vector<16x128xi1>, vector<16x128xf32>
    %115 = vector.broadcast %100 : f32 to vector<16x128xf32>
    %116 = arith.mulf %115, %114 : vector<16x128xf32>
    %117 = arith.addf %88, %116 : vector<16x128xf32>
    %118 = vector.broadcast %102 : f32 to vector<16x128xf32>
    %119 = arith.mulf %118, %114 : vector<16x128xf32>
    %120 = arith.addf %91, %119 : vector<16x128xf32>
    %121 = vector.broadcast %98 : f32 to vector<16x128xf32>
    %122 = arith.select %107, %121, %93 : vector<16x128xi1>, vector<16x128xf32>
    %123 = arith.ori %94, %107 : vector<16x128xi1>
    %c4_i32 = arith.constant 4 : i32
    %124 = arith.index_cast %c4_i32 : i32 to index
    %125 = memref.load %arg1[%124] : memref<16xf32, #tpu.memory_space<smem>>
    %126 = arith.index_cast %c4_i32 : i32 to index
    %127 = memref.load %arg2[%126] : memref<16xf32, #tpu.memory_space<smem>>
    %128 = arith.index_cast %c4_i32 : i32 to index
    %129 = memref.load %arg3[%128] : memref<16xf32, #tpu.memory_space<smem>>
    %130 = arith.index_cast %c4_i32 : i32 to index
    %131 = memref.load %arg4[%130] : memref<16xf32, #tpu.memory_space<smem>>
    %132 = vector.broadcast %125 : f32 to vector<16x128xf32>
    %133 = arith.subf %5, %132 : vector<16x128xf32>
    %134 = math.absf %133 : vector<16x128xf32>
    %cst_15 = arith.constant 9.99999982E-15 : f32
    %135 = vector.broadcast %cst_15 : f32 to vector<16x128xf32>
    %136 = arith.cmpf olt, %134, %135 : vector<16x128xf32>
    %137 = tpu.reciprocal %133 {approx = true} : vector<16x128xf32> -> vector<16x128xf32>
    %138 = arith.mulf %133, %137 : vector<16x128xf32>
    %cst_16 = arith.constant 2.000000e+00 : f32
    %139 = vector.broadcast %cst_16 : f32 to vector<16x128xf32>
    %140 = arith.subf %139, %138 : vector<16x128xf32>
    %141 = arith.mulf %137, %140 : vector<16x128xf32>
    %cst_17 = arith.constant 0.000000e+00 : f32
    %142 = vector.broadcast %cst_17 : f32 to vector<16x128xf32>
    %143 = arith.select %136, %142, %141 : vector<16x128xi1>, vector<16x128xf32>
    %144 = vector.broadcast %129 : f32 to vector<16x128xf32>
    %145 = arith.mulf %144, %143 : vector<16x128xf32>
    %146 = arith.addf %117, %145 : vector<16x128xf32>
    %147 = vector.broadcast %131 : f32 to vector<16x128xf32>
    %148 = arith.mulf %147, %143 : vector<16x128xf32>
    %149 = arith.addf %120, %148 : vector<16x128xf32>
    %150 = vector.broadcast %127 : f32 to vector<16x128xf32>
    %151 = arith.select %136, %150, %122 : vector<16x128xi1>, vector<16x128xf32>
    %152 = arith.ori %123, %136 : vector<16x128xi1>
    %c5_i32 = arith.constant 5 : i32
    %153 = arith.index_cast %c5_i32 : i32 to index
    %154 = memref.load %arg1[%153] : memref<16xf32, #tpu.memory_space<smem>>
    %155 = arith.index_cast %c5_i32 : i32 to index
    %156 = memref.load %arg2[%155] : memref<16xf32, #tpu.memory_space<smem>>
    %157 = arith.index_cast %c5_i32 : i32 to index
    %158 = memref.load %arg3[%157] : memref<16xf32, #tpu.memory_space<smem>>
    %159 = arith.index_cast %c5_i32 : i32 to index
    %160 = memref.load %arg4[%159] : memref<16xf32, #tpu.memory_space<smem>>
    %161 = vector.broadcast %154 : f32 to vector<16x128xf32>
    %162 = arith.subf %5, %161 : vector<16x128xf32>
    %163 = math.absf %162 : vector<16x128xf32>
    %cst_18 = arith.constant 9.99999982E-15 : f32
    %164 = vector.broadcast %cst_18 : f32 to vector<16x128xf32>
    %165 = arith.cmpf olt, %163, %164 : vector<16x128xf32>
    %166 = tpu.reciprocal %162 {approx = true} : vector<16x128xf32> -> vector<16x128xf32>
    %167 = arith.mulf %162, %166 : vector<16x128xf32>
    %cst_19 = arith.constant 2.000000e+00 : f32
    %168 = vector.broadcast %cst_19 : f32 to vector<16x128xf32>
    %169 = arith.subf %168, %167 : vector<16x128xf32>
    %170 = arith.mulf %166, %169 : vector<16x128xf32>
    %cst_20 = arith.constant 0.000000e+00 : f32
    %171 = vector.broadcast %cst_20 : f32 to vector<16x128xf32>
    %172 = arith.select %165, %171, %170 : vector<16x128xi1>, vector<16x128xf32>
    %173 = vector.broadcast %158 : f32 to vector<16x128xf32>
    %174 = arith.mulf %173, %172 : vector<16x128xf32>
    %175 = arith.addf %146, %174 : vector<16x128xf32>
    %176 = vector.broadcast %160 : f32 to vector<16x128xf32>
    %177 = arith.mulf %176, %172 : vector<16x128xf32>
    %178 = arith.addf %149, %177 : vector<16x128xf32>
    %179 = vector.broadcast %156 : f32 to vector<16x128xf32>
    %180 = arith.select %165, %179, %151 : vector<16x128xi1>, vector<16x128xf32>
    %181 = arith.ori %152, %165 : vector<16x128xi1>
    %c6_i32 = arith.constant 6 : i32
    %182 = arith.index_cast %c6_i32 : i32 to index
    %183 = memref.load %arg1[%182] : memref<16xf32, #tpu.memory_space<smem>>
    %184 = arith.index_cast %c6_i32 : i32 to index
    %185 = memref.load %arg2[%184] : memref<16xf32, #tpu.memory_space<smem>>
    %186 = arith.index_cast %c6_i32 : i32 to index
    %187 = memref.load %arg3[%186] : memref<16xf32, #tpu.memory_space<smem>>
    %188 = arith.index_cast %c6_i32 : i32 to index
    %189 = memref.load %arg4[%188] : memref<16xf32, #tpu.memory_space<smem>>
    %190 = vector.broadcast %183 : f32 to vector<16x128xf32>
    %191 = arith.subf %5, %190 : vector<16x128xf32>
    %192 = math.absf %191 : vector<16x128xf32>
    %cst_21 = arith.constant 9.99999982E-15 : f32
    %193 = vector.broadcast %cst_21 : f32 to vector<16x128xf32>
    %194 = arith.cmpf olt, %192, %193 : vector<16x128xf32>
    %195 = tpu.reciprocal %191 {approx = true} : vector<16x128xf32> -> vector<16x128xf32>
    %196 = arith.mulf %191, %195 : vector<16x128xf32>
    %cst_22 = arith.constant 2.000000e+00 : f32
    %197 = vector.broadcast %cst_22 : f32 to vector<16x128xf32>
    %198 = arith.subf %197, %196 : vector<16x128xf32>
    %199 = arith.mulf %195, %198 : vector<16x128xf32>
    %cst_23 = arith.constant 0.000000e+00 : f32
    %200 = vector.broadcast %cst_23 : f32 to vector<16x128xf32>
    %201 = arith.select %194, %200, %199 : vector<16x128xi1>, vector<16x128xf32>
    %202 = vector.broadcast %187 : f32 to vector<16x128xf32>
    %203 = arith.mulf %202, %201 : vector<16x128xf32>
    %204 = arith.addf %175, %203 : vector<16x128xf32>
    %205 = vector.broadcast %189 : f32 to vector<16x128xf32>
    %206 = arith.mulf %205, %201 : vector<16x128xf32>
    %207 = arith.addf %178, %206 : vector<16x128xf32>
    %208 = vector.broadcast %185 : f32 to vector<16x128xf32>
    %209 = arith.select %194, %208, %180 : vector<16x128xi1>, vector<16x128xf32>
    %210 = arith.ori %181, %194 : vector<16x128xi1>
    %c7_i32 = arith.constant 7 : i32
    %211 = arith.index_cast %c7_i32 : i32 to index
    %212 = memref.load %arg1[%211] : memref<16xf32, #tpu.memory_space<smem>>
    %213 = arith.index_cast %c7_i32 : i32 to index
    %214 = memref.load %arg2[%213] : memref<16xf32, #tpu.memory_space<smem>>
    %215 = arith.index_cast %c7_i32 : i32 to index
    %216 = memref.load %arg3[%215] : memref<16xf32, #tpu.memory_space<smem>>
    %217 = arith.index_cast %c7_i32 : i32 to index
    %218 = memref.load %arg4[%217] : memref<16xf32, #tpu.memory_space<smem>>
    %219 = vector.broadcast %212 : f32 to vector<16x128xf32>
    %220 = arith.subf %5, %219 : vector<16x128xf32>
    %221 = math.absf %220 : vector<16x128xf32>
    %cst_24 = arith.constant 9.99999982E-15 : f32
    %222 = vector.broadcast %cst_24 : f32 to vector<16x128xf32>
    %223 = arith.cmpf olt, %221, %222 : vector<16x128xf32>
    %224 = tpu.reciprocal %220 {approx = true} : vector<16x128xf32> -> vector<16x128xf32>
    %225 = arith.mulf %220, %224 : vector<16x128xf32>
    %cst_25 = arith.constant 2.000000e+00 : f32
    %226 = vector.broadcast %cst_25 : f32 to vector<16x128xf32>
    %227 = arith.subf %226, %225 : vector<16x128xf32>
    %228 = arith.mulf %224, %227 : vector<16x128xf32>
    %cst_26 = arith.constant 0.000000e+00 : f32
    %229 = vector.broadcast %cst_26 : f32 to vector<16x128xf32>
    %230 = arith.select %223, %229, %228 : vector<16x128xi1>, vector<16x128xf32>
    %231 = vector.broadcast %216 : f32 to vector<16x128xf32>
    %232 = arith.mulf %231, %230 : vector<16x128xf32>
    %233 = arith.addf %204, %232 : vector<16x128xf32>
    %234 = vector.broadcast %218 : f32 to vector<16x128xf32>
    %235 = arith.mulf %234, %230 : vector<16x128xf32>
    %236 = arith.addf %207, %235 : vector<16x128xf32>
    %237 = vector.broadcast %214 : f32 to vector<16x128xf32>
    %238 = arith.select %223, %237, %209 : vector<16x128xi1>, vector<16x128xf32>
    %239 = arith.ori %210, %223 : vector<16x128xi1>
    %c8_i32 = arith.constant 8 : i32
    %240 = arith.index_cast %c8_i32 : i32 to index
    %241 = memref.load %arg1[%240] : memref<16xf32, #tpu.memory_space<smem>>
    %242 = arith.index_cast %c8_i32 : i32 to index
    %243 = memref.load %arg2[%242] : memref<16xf32, #tpu.memory_space<smem>>
    %244 = arith.index_cast %c8_i32 : i32 to index
    %245 = memref.load %arg3[%244] : memref<16xf32, #tpu.memory_space<smem>>
    %246 = arith.index_cast %c8_i32 : i32 to index
    %247 = memref.load %arg4[%246] : memref<16xf32, #tpu.memory_space<smem>>
    %248 = vector.broadcast %241 : f32 to vector<16x128xf32>
    %249 = arith.subf %5, %248 : vector<16x128xf32>
    %250 = math.absf %249 : vector<16x128xf32>
    %cst_27 = arith.constant 9.99999982E-15 : f32
    %251 = vector.broadcast %cst_27 : f32 to vector<16x128xf32>
    %252 = arith.cmpf olt, %250, %251 : vector<16x128xf32>
    %253 = tpu.reciprocal %249 {approx = true} : vector<16x128xf32> -> vector<16x128xf32>
    %254 = arith.mulf %249, %253 : vector<16x128xf32>
    %cst_28 = arith.constant 2.000000e+00 : f32
    %255 = vector.broadcast %cst_28 : f32 to vector<16x128xf32>
    %256 = arith.subf %255, %254 : vector<16x128xf32>
    %257 = arith.mulf %253, %256 : vector<16x128xf32>
    %cst_29 = arith.constant 0.000000e+00 : f32
    %258 = vector.broadcast %cst_29 : f32 to vector<16x128xf32>
    %259 = arith.select %252, %258, %257 : vector<16x128xi1>, vector<16x128xf32>
    %260 = vector.broadcast %245 : f32 to vector<16x128xf32>
    %261 = arith.mulf %260, %259 : vector<16x128xf32>
    %262 = arith.addf %233, %261 : vector<16x128xf32>
    %263 = vector.broadcast %247 : f32 to vector<16x128xf32>
    %264 = arith.mulf %263, %259 : vector<16x128xf32>
    %265 = arith.addf %236, %264 : vector<16x128xf32>
    %266 = vector.broadcast %243 : f32 to vector<16x128xf32>
    %267 = arith.select %252, %266, %238 : vector<16x128xi1>, vector<16x128xf32>
    %268 = arith.ori %239, %252 : vector<16x128xi1>
    %c9_i32 = arith.constant 9 : i32
    %269 = arith.index_cast %c9_i32 : i32 to index
    %270 = memref.load %arg1[%269] : memref<16xf32, #tpu.memory_space<smem>>
    %271 = arith.index_cast %c9_i32 : i32 to index
    %272 = memref.load %arg2[%271] : memref<16xf32, #tpu.memory_space<smem>>
    %273 = arith.index_cast %c9_i32 : i32 to index
    %274 = memref.load %arg3[%273] : memref<16xf32, #tpu.memory_space<smem>>
    %275 = arith.index_cast %c9_i32 : i32 to index
    %276 = memref.load %arg4[%275] : memref<16xf32, #tpu.memory_space<smem>>
    %277 = vector.broadcast %270 : f32 to vector<16x128xf32>
    %278 = arith.subf %5, %277 : vector<16x128xf32>
    %279 = math.absf %278 : vector<16x128xf32>
    %cst_30 = arith.constant 9.99999982E-15 : f32
    %280 = vector.broadcast %cst_30 : f32 to vector<16x128xf32>
    %281 = arith.cmpf olt, %279, %280 : vector<16x128xf32>
    %282 = tpu.reciprocal %278 {approx = true} : vector<16x128xf32> -> vector<16x128xf32>
    %283 = arith.mulf %278, %282 : vector<16x128xf32>
    %cst_31 = arith.constant 2.000000e+00 : f32
    %284 = vector.broadcast %cst_31 : f32 to vector<16x128xf32>
    %285 = arith.subf %284, %283 : vector<16x128xf32>
    %286 = arith.mulf %282, %285 : vector<16x128xf32>
    %cst_32 = arith.constant 0.000000e+00 : f32
    %287 = vector.broadcast %cst_32 : f32 to vector<16x128xf32>
    %288 = arith.select %281, %287, %286 : vector<16x128xi1>, vector<16x128xf32>
    %289 = vector.broadcast %274 : f32 to vector<16x128xf32>
    %290 = arith.mulf %289, %288 : vector<16x128xf32>
    %291 = arith.addf %262, %290 : vector<16x128xf32>
    %292 = vector.broadcast %276 : f32 to vector<16x128xf32>
    %293 = arith.mulf %292, %288 : vector<16x128xf32>
    %294 = arith.addf %265, %293 : vector<16x128xf32>
    %295 = vector.broadcast %272 : f32 to vector<16x128xf32>
    %296 = arith.select %281, %295, %267 : vector<16x128xi1>, vector<16x128xf32>
    %297 = arith.ori %268, %281 : vector<16x128xi1>
    %c10_i32 = arith.constant 10 : i32
    %298 = arith.index_cast %c10_i32 : i32 to index
    %299 = memref.load %arg1[%298] : memref<16xf32, #tpu.memory_space<smem>>
    %300 = arith.index_cast %c10_i32 : i32 to index
    %301 = memref.load %arg2[%300] : memref<16xf32, #tpu.memory_space<smem>>
    %302 = arith.index_cast %c10_i32 : i32 to index
    %303 = memref.load %arg3[%302] : memref<16xf32, #tpu.memory_space<smem>>
    %304 = arith.index_cast %c10_i32 : i32 to index
    %305 = memref.load %arg4[%304] : memref<16xf32, #tpu.memory_space<smem>>
    %306 = vector.broadcast %299 : f32 to vector<16x128xf32>
    %307 = arith.subf %5, %306 : vector<16x128xf32>
    %308 = math.absf %307 : vector<16x128xf32>
    %cst_33 = arith.constant 9.99999982E-15 : f32
    %309 = vector.broadcast %cst_33 : f32 to vector<16x128xf32>
    %310 = arith.cmpf olt, %308, %309 : vector<16x128xf32>
    %311 = tpu.reciprocal %307 {approx = true} : vector<16x128xf32> -> vector<16x128xf32>
    %312 = arith.mulf %307, %311 : vector<16x128xf32>
    %cst_34 = arith.constant 2.000000e+00 : f32
    %313 = vector.broadcast %cst_34 : f32 to vector<16x128xf32>
    %314 = arith.subf %313, %312 : vector<16x128xf32>
    %315 = arith.mulf %311, %314 : vector<16x128xf32>
    %cst_35 = arith.constant 0.000000e+00 : f32
    %316 = vector.broadcast %cst_35 : f32 to vector<16x128xf32>
    %317 = arith.select %310, %316, %315 : vector<16x128xi1>, vector<16x128xf32>
    %318 = vector.broadcast %303 : f32 to vector<16x128xf32>
    %319 = arith.mulf %318, %317 : vector<16x128xf32>
    %320 = arith.addf %291, %319 : vector<16x128xf32>
    %321 = vector.broadcast %305 : f32 to vector<16x128xf32>
    %322 = arith.mulf %321, %317 : vector<16x128xf32>
    %323 = arith.addf %294, %322 : vector<16x128xf32>
    %324 = vector.broadcast %301 : f32 to vector<16x128xf32>
    %325 = arith.select %310, %324, %296 : vector<16x128xi1>, vector<16x128xf32>
    %326 = arith.ori %297, %310 : vector<16x128xi1>
    %c11_i32 = arith.constant 11 : i32
    %327 = arith.index_cast %c11_i32 : i32 to index
    %328 = memref.load %arg1[%327] : memref<16xf32, #tpu.memory_space<smem>>
    %329 = arith.index_cast %c11_i32 : i32 to index
    %330 = memref.load %arg2[%329] : memref<16xf32, #tpu.memory_space<smem>>
    %331 = arith.index_cast %c11_i32 : i32 to index
    %332 = memref.load %arg3[%331] : memref<16xf32, #tpu.memory_space<smem>>
    %333 = arith.index_cast %c11_i32 : i32 to index
    %334 = memref.load %arg4[%333] : memref<16xf32, #tpu.memory_space<smem>>
    %335 = vector.broadcast %328 : f32 to vector<16x128xf32>
    %336 = arith.subf %5, %335 : vector<16x128xf32>
    %337 = math.absf %336 : vector<16x128xf32>
    %cst_36 = arith.constant 9.99999982E-15 : f32
    %338 = vector.broadcast %cst_36 : f32 to vector<16x128xf32>
    %339 = arith.cmpf olt, %337, %338 : vector<16x128xf32>
    %340 = tpu.reciprocal %336 {approx = true} : vector<16x128xf32> -> vector<16x128xf32>
    %341 = arith.mulf %336, %340 : vector<16x128xf32>
    %cst_37 = arith.constant 2.000000e+00 : f32
    %342 = vector.broadcast %cst_37 : f32 to vector<16x128xf32>
    %343 = arith.subf %342, %341 : vector<16x128xf32>
    %344 = arith.mulf %340, %343 : vector<16x128xf32>
    %cst_38 = arith.constant 0.000000e+00 : f32
    %345 = vector.broadcast %cst_38 : f32 to vector<16x128xf32>
    %346 = arith.select %339, %345, %344 : vector<16x128xi1>, vector<16x128xf32>
    %347 = vector.broadcast %332 : f32 to vector<16x128xf32>
    %348 = arith.mulf %347, %346 : vector<16x128xf32>
    %349 = arith.addf %320, %348 : vector<16x128xf32>
    %350 = vector.broadcast %334 : f32 to vector<16x128xf32>
    %351 = arith.mulf %350, %346 : vector<16x128xf32>
    %352 = arith.addf %323, %351 : vector<16x128xf32>
    %353 = vector.broadcast %330 : f32 to vector<16x128xf32>
    %354 = arith.select %339, %353, %325 : vector<16x128xi1>, vector<16x128xf32>
    %355 = arith.ori %326, %339 : vector<16x128xi1>
    %c12_i32 = arith.constant 12 : i32
    %356 = arith.index_cast %c12_i32 : i32 to index
    %357 = memref.load %arg1[%356] : memref<16xf32, #tpu.memory_space<smem>>
    %358 = arith.index_cast %c12_i32 : i32 to index
    %359 = memref.load %arg2[%358] : memref<16xf32, #tpu.memory_space<smem>>
    %360 = arith.index_cast %c12_i32 : i32 to index
    %361 = memref.load %arg3[%360] : memref<16xf32, #tpu.memory_space<smem>>
    %362 = arith.index_cast %c12_i32 : i32 to index
    %363 = memref.load %arg4[%362] : memref<16xf32, #tpu.memory_space<smem>>
    %364 = vector.broadcast %357 : f32 to vector<16x128xf32>
    %365 = arith.subf %5, %364 : vector<16x128xf32>
    %366 = math.absf %365 : vector<16x128xf32>
    %cst_39 = arith.constant 9.99999982E-15 : f32
    %367 = vector.broadcast %cst_39 : f32 to vector<16x128xf32>
    %368 = arith.cmpf olt, %366, %367 : vector<16x128xf32>
    %369 = tpu.reciprocal %365 {approx = true} : vector<16x128xf32> -> vector<16x128xf32>
    %370 = arith.mulf %365, %369 : vector<16x128xf32>
    %cst_40 = arith.constant 2.000000e+00 : f32
    %371 = vector.broadcast %cst_40 : f32 to vector<16x128xf32>
    %372 = arith.subf %371, %370 : vector<16x128xf32>
    %373 = arith.mulf %369, %372 : vector<16x128xf32>
    %cst_41 = arith.constant 0.000000e+00 : f32
    %374 = vector.broadcast %cst_41 : f32 to vector<16x128xf32>
    %375 = arith.select %368, %374, %373 : vector<16x128xi1>, vector<16x128xf32>
    %376 = vector.broadcast %361 : f32 to vector<16x128xf32>
    %377 = arith.mulf %376, %375 : vector<16x128xf32>
    %378 = arith.addf %349, %377 : vector<16x128xf32>
    %379 = vector.broadcast %363 : f32 to vector<16x128xf32>
    %380 = arith.mulf %379, %375 : vector<16x128xf32>
    %381 = arith.addf %352, %380 : vector<16x128xf32>
    %382 = vector.broadcast %359 : f32 to vector<16x128xf32>
    %383 = arith.select %368, %382, %354 : vector<16x128xi1>, vector<16x128xf32>
    %384 = arith.ori %355, %368 : vector<16x128xi1>
    %c13_i32 = arith.constant 13 : i32
    %385 = arith.index_cast %c13_i32 : i32 to index
    %386 = memref.load %arg1[%385] : memref<16xf32, #tpu.memory_space<smem>>
    %387 = arith.index_cast %c13_i32 : i32 to index
    %388 = memref.load %arg2[%387] : memref<16xf32, #tpu.memory_space<smem>>
    %389 = arith.index_cast %c13_i32 : i32 to index
    %390 = memref.load %arg3[%389] : memref<16xf32, #tpu.memory_space<smem>>
    %391 = arith.index_cast %c13_i32 : i32 to index
    %392 = memref.load %arg4[%391] : memref<16xf32, #tpu.memory_space<smem>>
    %393 = vector.broadcast %386 : f32 to vector<16x128xf32>
    %394 = arith.subf %5, %393 : vector<16x128xf32>
    %395 = math.absf %394 : vector<16x128xf32>
    %cst_42 = arith.constant 9.99999982E-15 : f32
    %396 = vector.broadcast %cst_42 : f32 to vector<16x128xf32>
    %397 = arith.cmpf olt, %395, %396 : vector<16x128xf32>
    %398 = tpu.reciprocal %394 {approx = true} : vector<16x128xf32> -> vector<16x128xf32>
    %399 = arith.mulf %394, %398 : vector<16x128xf32>
    %cst_43 = arith.constant 2.000000e+00 : f32
    %400 = vector.broadcast %cst_43 : f32 to vector<16x128xf32>
    %401 = arith.subf %400, %399 : vector<16x128xf32>
    %402 = arith.mulf %398, %401 : vector<16x128xf32>
    %cst_44 = arith.constant 0.000000e+00 : f32
    %403 = vector.broadcast %cst_44 : f32 to vector<16x128xf32>
    %404 = arith.select %397, %403, %402 : vector<16x128xi1>, vector<16x128xf32>
    %405 = vector.broadcast %390 : f32 to vector<16x128xf32>
    %406 = arith.mulf %405, %404 : vector<16x128xf32>
    %407 = arith.addf %378, %406 : vector<16x128xf32>
    %408 = vector.broadcast %392 : f32 to vector<16x128xf32>
    %409 = arith.mulf %408, %404 : vector<16x128xf32>
    %410 = arith.addf %381, %409 : vector<16x128xf32>
    %411 = vector.broadcast %388 : f32 to vector<16x128xf32>
    %412 = arith.select %397, %411, %383 : vector<16x128xi1>, vector<16x128xf32>
    %413 = arith.ori %384, %397 : vector<16x128xi1>
    %c14_i32 = arith.constant 14 : i32
    %414 = arith.index_cast %c14_i32 : i32 to index
    %415 = memref.load %arg1[%414] : memref<16xf32, #tpu.memory_space<smem>>
    %416 = arith.index_cast %c14_i32 : i32 to index
    %417 = memref.load %arg2[%416] : memref<16xf32, #tpu.memory_space<smem>>
    %418 = arith.index_cast %c14_i32 : i32 to index
    %419 = memref.load %arg3[%418] : memref<16xf32, #tpu.memory_space<smem>>
    %420 = arith.index_cast %c14_i32 : i32 to index
    %421 = memref.load %arg4[%420] : memref<16xf32, #tpu.memory_space<smem>>
    %422 = vector.broadcast %415 : f32 to vector<16x128xf32>
    %423 = arith.subf %5, %422 : vector<16x128xf32>
    %424 = math.absf %423 : vector<16x128xf32>
    %cst_45 = arith.constant 9.99999982E-15 : f32
    %425 = vector.broadcast %cst_45 : f32 to vector<16x128xf32>
    %426 = arith.cmpf olt, %424, %425 : vector<16x128xf32>
    %427 = tpu.reciprocal %423 {approx = true} : vector<16x128xf32> -> vector<16x128xf32>
    %428 = arith.mulf %423, %427 : vector<16x128xf32>
    %cst_46 = arith.constant 2.000000e+00 : f32
    %429 = vector.broadcast %cst_46 : f32 to vector<16x128xf32>
    %430 = arith.subf %429, %428 : vector<16x128xf32>
    %431 = arith.mulf %427, %430 : vector<16x128xf32>
    %cst_47 = arith.constant 0.000000e+00 : f32
    %432 = vector.broadcast %cst_47 : f32 to vector<16x128xf32>
    %433 = arith.select %426, %432, %431 : vector<16x128xi1>, vector<16x128xf32>
    %434 = vector.broadcast %419 : f32 to vector<16x128xf32>
    %435 = arith.mulf %434, %433 : vector<16x128xf32>
    %436 = arith.addf %407, %435 : vector<16x128xf32>
    %437 = vector.broadcast %421 : f32 to vector<16x128xf32>
    %438 = arith.mulf %437, %433 : vector<16x128xf32>
    %439 = arith.addf %410, %438 : vector<16x128xf32>
    %440 = vector.broadcast %417 : f32 to vector<16x128xf32>
    %441 = arith.select %426, %440, %412 : vector<16x128xi1>, vector<16x128xf32>
    %442 = arith.ori %413, %426 : vector<16x128xi1>
    %c15_i32 = arith.constant 15 : i32
    %443 = arith.index_cast %c15_i32 : i32 to index
    %444 = memref.load %arg1[%443] : memref<16xf32, #tpu.memory_space<smem>>
    %445 = arith.index_cast %c15_i32 : i32 to index
    %446 = memref.load %arg2[%445] : memref<16xf32, #tpu.memory_space<smem>>
    %447 = arith.index_cast %c15_i32 : i32 to index
    %448 = memref.load %arg3[%447] : memref<16xf32, #tpu.memory_space<smem>>
    %449 = arith.index_cast %c15_i32 : i32 to index
    %450 = memref.load %arg4[%449] : memref<16xf32, #tpu.memory_space<smem>>
    %451 = vector.broadcast %444 : f32 to vector<16x128xf32>
    %452 = arith.subf %5, %451 : vector<16x128xf32>
    %453 = math.absf %452 : vector<16x128xf32>
    %cst_48 = arith.constant 9.99999982E-15 : f32
    %454 = vector.broadcast %cst_48 : f32 to vector<16x128xf32>
    %455 = arith.cmpf olt, %453, %454 : vector<16x128xf32>
    %456 = tpu.reciprocal %452 {approx = true} : vector<16x128xf32> -> vector<16x128xf32>
    %457 = arith.mulf %452, %456 : vector<16x128xf32>
    %cst_49 = arith.constant 2.000000e+00 : f32
    %458 = vector.broadcast %cst_49 : f32 to vector<16x128xf32>
    %459 = arith.subf %458, %457 : vector<16x128xf32>
    %460 = arith.mulf %456, %459 : vector<16x128xf32>
    %cst_50 = arith.constant 0.000000e+00 : f32
    %461 = vector.broadcast %cst_50 : f32 to vector<16x128xf32>
    %462 = arith.select %455, %461, %460 : vector<16x128xi1>, vector<16x128xf32>
    %463 = vector.broadcast %448 : f32 to vector<16x128xf32>
    %464 = arith.mulf %463, %462 : vector<16x128xf32>
    %465 = arith.addf %436, %464 : vector<16x128xf32>
    %466 = vector.broadcast %450 : f32 to vector<16x128xf32>
    %467 = arith.mulf %466, %462 : vector<16x128xf32>
    %468 = arith.addf %439, %467 : vector<16x128xf32>
    %469 = vector.broadcast %446 : f32 to vector<16x128xf32>
    %470 = arith.select %455, %469, %441 : vector<16x128xi1>, vector<16x128xf32>
    %471 = arith.ori %442, %455 : vector<16x128xi1>
    %c16_i32_51 = arith.constant 16 : i32
    %472 = arith.divf %465, %468 : vector<16x128xf32>
    %473 = arith.select %471, %470, %472 : vector<16x128xi1>, vector<16x128xf32>
    %474 = arith.index_cast %3 : i32 to index
    %c0_52 = arith.constant 0 : index
    %475 = vector.load %arg6[%474, %c0_52] : memref<16x128xf32, #tpu.memory_space<vmem>>, vector<16x128xf32>
    tpu.vector_store %arg6[%474, %c0_52], %473 {strides = array<i32>} : memref<16x128xf32, #tpu.memory_space<vmem>>, vector<16x128xf32>,
    %c1_i32_53 = arith.constant 1 : i32
    return
  }
  func.func @transform_0(%arg0: i32) -> i32 {
    %c0_i32 = arith.constant 0 : i32
    %c0_i32_0 = arith.constant 0 : i32
    return %c0_i32 : i32
  }
  func.func @transform_1(%arg0: i32) -> i32 {
    %c0_i32 = arith.constant 0 : i32
    %c0_i32_0 = arith.constant 0 : i32
    return %c0_i32 : i32
  }
  func.func @transform_2(%arg0: i32) -> i32 {
    %c0_i32 = arith.constant 0 : i32
    %c0_i32_0 = arith.constant 0 : i32
    return %c0_i32 : i32
  }
  func.func @transform_3(%arg0: i32) -> i32 {
    %c0_i32 = arith.constant 0 : i32
    %c0_i32_0 = arith.constant 0 : i32
    return %c0_i32 : i32
  }
  func.func @transform_4(%arg0: i32) -> (i32, i32) {
    %c0_i32 = arith.constant 0 : i32
    %c0_i32_0 = arith.constant 0 : i32
    return %arg0, %c0_i32 : i32, i32
  }
  func.func @transform_5(%arg0: i32) -> (i32, i32) {
    %c0_i32 = arith.constant 0 : i32
    %c0_i32_0 = arith.constant 0 : i32
    return %arg0, %c0_i32 : i32, i32
  }
}

</mosaic_0001>

<llo_original>
// kernel: tpu_custom_call.1
$region0: #{tpu_custom_call.1}
  #allocation0 [shape = 'u32[]', space=smem, size = 0x4, offset = 0x4, fixed_abs, tag = 'smem constant byte address 0x4 - core index']
  #allocation1 [shape = 'u32[144,128]{1,0:T(1,128)}', space=vmem, size = 0x12000, scoped, tag = 'internal scratch']
  %s0 = inlined_call_operand.hbm [shape: f32[16], index: 0, kind: input, shape index: {}]
  %s1 = inlined_call_operand.vmem [shape: f32[16], index: 1, kind: input, shape index: {}]
  %s2 = inlined_call_operand.vmem [shape: f32[16], index: 2, kind: input, shape index: {}]
  %s3 = inlined_call_operand.vmem [shape: f32[16], index: 3, kind: input, shape index: {}]
  %s4 = inlined_call_operand.hbm [shape: f32[16,128], index: 4, kind: input, shape index: {}]
  %s5 = inlined_call_operand.hbm [shape: f32[16,128], index: 5, kind: output, shape index: {}]
  %s6 = sld [smem:[#allocation0]]
  $region50: #{tpu_custom_call.1} parent=0
    _
  %s8 = ssub.s32 1, %s6
  %s9 = scalar_select 0, %s8, %s6
  $region1: #{tpu_custom_call.1} parent=0
    #allocation2 [shape = 'u8[512]{0}', space=smem, size = 0x200, scoped, tag = 'input window, operand 0, single buffered']
    #allocation3 [shape = 's32[1]{0}', space=sflag, size = 0x4, scoped, tag = 'scoped memory for tpu_custom_call.1']
    #allocation4 [shape = 's32[1]{0}', space=sflag, size = 0x4, scoped, tag = 'scoped memory for tpu_custom_call.1']
    #allocation5 [shape = 's32[1]{0}', space=sflag, size = 0x4, scoped, tag = 'scoped memory for tpu_custom_call.1']
    #allocation6 [shape = 's32[1]{0}', space=sflag, size = 0x4, scoped, tag = 'scoped memory for tpu_custom_call.1']
    #allocation7 [shape = 'u8[512]{0}', space=smem, size = 0x200, scoped, tag = 'input window, operand 1, single buffered']
    #allocation8 [shape = 'u8[512]{0}', space=smem, size = 0x200, scoped, tag = 'input window, operand 2, single buffered']
    #allocation9 [shape = 's32[1]{0}', space=sflag, size = 0x4, scoped, tag = 'scoped memory for tpu_custom_call.1']
    #allocation10 [shape = 'u8[512]{0}', space=smem, size = 0x200, scoped, tag = 'input window, operand 3, single buffered']
    #allocation11 [shape = 'u8[8192]{0}', space=vmem, size = 0x2000, scoped, tag = 'input window, operand 4, single buffered']
    #allocation12 [shape = 'u8[8192]{0}', space=vmem, size = 0x2000, scoped, tag = 'output window, operand 0, single buffered']
    %10 = vsyncpa [#allocation5], 0
    %11 = vsyncpa [#allocation6], 0
    %12 = vsyncpa [#allocation9], 0
    %13 = vsyncpa [#allocation3], 0
    %14 = vsyncpa [#allocation4], 0
    // Predicated region
    $region2: #{tpu_custom_call.1} parent=1 // pred_check
      _
    $region3: #{tpu_custom_call.1} parent=1 // pred_check_branch
      %16 = sbr.rel (0) target = $region5
    $region4: #{tpu_custom_call.1} parent=1 // pred_region
      %s18 = ssub.s32 16, 16
      %19 = vsyncadd [#allocation5], %s18
      %22 = dma.hbm_to_smem %s0, 16, [#allocation2], [#allocation5]
    $region5: #{tpu_custom_call.1} parent=1 // pred_fallthru
      _
    // Predicated region
    $region6: #{tpu_custom_call.1} parent=1 // pred_check
      _
    $region7: #{tpu_custom_call.1} parent=1 // pred_check_branch
      %24 = sbr.rel (0) target = $region9
    $region8: #{tpu_custom_call.1} parent=1 // pred_region
      %s26 = ssub.s32 16, 16
      %27 = vsyncadd [#allocation6], %s26
      %s29 = sshll.u32 %s1, 4
      %s30 = int_to_ptr.vmem [resolvable:$true] %s29
      %32 = dma.vmem_to_smem %s30, 16, [#allocation7], [#allocation6]
    $region9: #{tpu_custom_call.1} parent=1 // pred_fallthru
      _
    // Predicated region
    $region10: #{tpu_custom_call.1} parent=1 // pred_check
      _
    $region11: #{tpu_custom_call.1} parent=1 // pred_check_branch
      %34 = sbr.rel (0) target = $region13
    $region12: #{tpu_custom_call.1} parent=1 // pred_region
      %s36 = ssub.s32 16, 16
      %37 = vsyncadd [#allocation9], %s36
      %s39 = sshll.u32 %s2, 4
      %s40 = int_to_ptr.vmem [resolvable:$true] %s39
      %42 = dma.vmem_to_smem %s40, 16, [#allocation8], [#allocation9]
    $region13: #{tpu_custom_call.1} parent=1 // pred_fallthru
      _
    // Predicated region
    $region14: #{tpu_custom_call.1} parent=1 // pred_check
      _
    $region15: #{tpu_custom_call.1} parent=1 // pred_check_branch
      %44 = sbr.rel (0) target = $region17
    $region16: #{tpu_custom_call.1} parent=1 // pred_region
      %s46 = ssub.s32 16, 16
      %47 = vsyncadd [#allocation9], %s46
      %s49 = sshll.u32 %s3, 4
      %s50 = int_to_ptr.vmem [resolvable:$true] %s49
      %52 = dma.vmem_to_smem %s50, 16, [#allocation10], [#allocation9]
    $region17: #{tpu_custom_call.1} parent=1 // pred_fallthru
      _
    // Predicated region
    $region18: #{tpu_custom_call.1} parent=1 // pred_check
      _
    $region19: #{tpu_custom_call.1} parent=1 // pred_check_branch
      %54 = sbr.rel (0) target = $region21
    $region20: #{tpu_custom_call.1} parent=1 // pred_region
      %s56 = ssub.s32 256, 256
      %57 = vsyncadd [#allocation3], %s56
      %s58 = sshll.u32 [#allocation11], 4
      %s59 = int_to_ptr.vmem [resolvable:$true] %s58
      %64 = dma.hbm_to_vmem [thread:$0]  %s4, 256, %s59, [#allocation3], 128, 128, 8
    $region21: #{tpu_custom_call.1} parent=1 // pred_fallthru
      _
    // Predicated region
    $region22: #{tpu_custom_call.1} parent=1 // pred_check
      _
    $region23: #{tpu_custom_call.1} parent=1 // pred_check_branch
      %66 = sbr.rel (0) target = $region25
    $region24: #{tpu_custom_call.1} parent=1 // pred_region
      %67 = dma.done [#allocation5], 16
    $region25: #{tpu_custom_call.1} parent=1 // pred_fallthru
      _
    // Predicated region
    $region26: #{tpu_custom_call.1} parent=1 // pred_check
      _
    $region27: #{tpu_custom_call.1} parent=1 // pred_check_branch
      %69 = sbr.rel (0) target = $region29
    $region28: #{tpu_custom_call.1} parent=1 // pred_region
      %70 = dma.done [#allocation6], 16
    $region29: #{tpu_custom_call.1} parent=1 // pred_fallthru
      _
    // Predicated region
    $region30: #{tpu_custom_call.1} parent=1 // pred_check
      _
    $region31: #{tpu_custom_call.1} parent=1 // pred_check_branch
      %72 = sbr.rel (0) target = $region33
    $region32: #{tpu_custom_call.1} parent=1 // pred_region
      %73 = dma.done [#allocation9], 16
    $region33: #{tpu_custom_call.1} parent=1 // pred_fallthru
      _
    // Predicated region
    $region34: #{tpu_custom_call.1} parent=1 // pred_check
      _
    $region35: #{tpu_custom_call.1} parent=1 // pred_check_branch
      %75 = sbr.rel (0) target = $region37
    $region36: #{tpu_custom_call.1} parent=1 // pred_region
      %76 = dma.done [#allocation9], 16
    $region37: #{tpu_custom_call.1} parent=1 // pred_fallthru
      _
    // Predicated region
    $region38: #{tpu_custom_call.1} parent=1 // pred_check
      _
    $region39: #{tpu_custom_call.1} parent=1 // pred_check_branch
      %78 = sbr.rel (0) target = $region41
    $region40: #{tpu_custom_call.1} parent=1 // pred_region
      %79 = dma.done [#allocation3], 256
    $region41: #{tpu_custom_call.1} parent=1 // pred_fallthru
      _
    %80 = sfence
    %v81 = vld [vmem:[#allocation11] sm:$0xff]
    %v82 = vld [vmem:[#allocation11 + $0x8] sm:$0xff]
    %s83 = sld [smem:[#allocation2]]
    %s84 = sld [smem:[#allocation7]]
    %s85 = sld [smem:[#allocation8]]
    %s86 = sld [smem:[#allocation10]]
    %v87 = vstv %s83
    %v88 = vsub.f32 %v81, %v87
    %v89 = vsub.f32 %v82, %v87
    %v90 = vand.u32 2147483647, %v88
    %v91 = vand.u32 2147483647, %v89
    %vm92 = vcmp.lt.f32.partialorder %v90, 1e-14
    %vm93 = vcmp.lt.f32.partialorder %v91, 1e-14
    %v94 = vrcp.pop %v88
    %v95 = vrcp.pop %v89
    %v96 = vmul.f32 %v88, %v94
    %v97 = vmul.f32 %v89, %v95
    %v98 = vsub.f32 2.0, %v96
    %v99 = vsub.f32 2.0, %v97
    %v100 = vmul.f32 %v94, %v98
    %v101 = vmul.f32 %v95, %v99
    %v102 = vsel %vm92, 0.0, %v100
    %v103 = vsel %vm93, 0.0, %v101
    %v104 = vstv %s85
    %v105 = vmul.f32 %v104, %v102
    %v106 = vmul.f32 %v104, %v103
    %v107 = vadd.f32 %v105, 0.0
    %v108 = vadd.f32 %v106, 0.0
    %v109 = vstv %s86
    %v110 = vmul.f32 %v109, %v102
    %v111 = vmul.f32 %v109, %v103
    %v112 = vadd.f32 %v110, 0.0
    %v113 = vadd.f32 %v111, 0.0
    %v114 = vstv %s84
    %v115 = vsel %vm92, %v114, 0.0
    %v116 = vsel %vm93, %v114, 0.0
    %s117 = sld [smem:[#allocation2 + $0x1]]
    %s118 = sld [smem:[#allocation7 + $0x1]]
    %s119 = sld [smem:[#allocation8 + $0x1]]
    %s120 = sld [smem:[#allocation10 + $0x1]]
    %v121 = vstv %s117
    %v122 = vsub.f32 %v81, %v121
    %v123 = vsub.f32 %v82, %v121
    %v124 = vand.u32 2147483647, %v122
    %v125 = vand.u32 2147483647, %v123
    %vm126 = vcmp.lt.f32.partialorder %v124, 1e-14
    %vm127 = vcmp.lt.f32.partialorder %v125, 1e-14
    %v128 = vrcp.pop %v122
    %v129 = vrcp.pop %v123
    %v130 = vmul.f32 %v122, %v128
    %v131 = vmul.f32 %v123, %v129
    %v132 = vsub.f32 2.0, %v130
    %v133 = vsub.f32 2.0, %v131
    %v134 = vmul.f32 %v128, %v132
    %v135 = vmul.f32 %v129, %v133
    %v136 = vsel %vm126, 0.0, %v134
    %v137 = vsel %vm127, 0.0, %v135
    %v138 = vstv %s119
    %v139 = vmul.f32 %v138, %v136
    %v140 = vmul.f32 %v138, %v137
    %v141 = vadd.f32 %v107, %v139
    %v142 = vadd.f32 %v108, %v140
    %v143 = vstv %s120
    %v144 = vmul.f32 %v143, %v136
    %v145 = vmul.f32 %v143, %v137
    %v146 = vadd.f32 %v112, %v144
    %v147 = vadd.f32 %v113, %v145
    %v148 = vstv %s118
    %v149 = vsel %vm126, %v148, %v115
    %v150 = vsel %vm127, %v148, %v116
    %vm151 = vmor %vm92, %vm126
    %vm152 = vmor %vm93, %vm127
    %s153 = sld [smem:[#allocation2 + $0x2]]
    %s154 = sld [smem:[#allocation7 + $0x2]]
    %s155 = sld [smem:[#allocation8 + $0x2]]
    %s156 = sld [smem:[#allocation10 + $0x2]]
    %v157 = vstv %s153
    %v158 = vsub.f32 %v81, %v157
    %v159 = vsub.f32 %v82, %v157
    %v160 = vand.u32 2147483647, %v158
    %v161 = vand.u32 2147483647, %v159
    %vm162 = vcmp.lt.f32.partialorder %v160, 1e-14
    %vm163 = vcmp.lt.f32.partialorder %v161, 1e-14
    %v164 = vrcp.pop %v158
    %v165 = vrcp.pop %v159
    %v166 = vmul.f32 %v158, %v164
    %v167 = vmul.f32 %v159, %v165
    %v168 = vsub.f32 2.0, %v166
    %v169 = vsub.f32 2.0, %v167
    %v170 = vmul.f32 %v164, %v168
    %v171 = vmul.f32 %v165, %v169
    %v172 = vsel %vm162, 0.0, %v170
    %v173 = vsel %vm163, 0.0, %v171
    %v174 = vstv %s155
    %v175 = vmul.f32 %v174, %v172
    %v176 = vmul.f32 %v174, %v173
    %v177 = vadd.f32 %v141, %v175
    %v178 = vadd.f32 %v142, %v176
    %v179 = vstv %s156
    %v180 = vmul.f32 %v179, %v172
    %v181 = vmul.f32 %v179, %v173
    %v182 = vadd.f32 %v146, %v180
    %v183 = vadd.f32 %v147, %v181
    %v184 = vstv %s154
    %v185 = vsel %vm162, %v184, %v149
    %v186 = vsel %vm163, %v184, %v150
    %vm187 = vmor %vm151, %vm162
    %vm188 = vmor %vm152, %vm163
    %s189 = sld [smem:[#allocation2 + $0x3]]
    %s190 = sld [smem:[#allocation7 + $0x3]]
    %s191 = sld [smem:[#allocation8 + $0x3]]
    %s192 = sld [smem:[#allocation10 + $0x3]]
    %v193 = vstv %s189
    %v194 = vsub.f32 %v81, %v193
    %v195 = vsub.f32 %v82, %v193
    %v196 = vand.u32 2147483647, %v194
    %v197 = vand.u32 2147483647, %v195
    %vm198 = vcmp.lt.f32.partialorder %v196, 1e-14
    %vm199 = vcmp.lt.f32.partialorder %v197, 1e-14
    %v200 = vrcp.pop %v194
    %v201 = vrcp.pop %v195
    %v202 = vmul.f32 %v194, %v200
    %v203 = vmul.f32 %v195, %v201
    %v204 = vsub.f32 2.0, %v202
    %v205 = vsub.f32 2.0, %v203
    %v206 = vmul.f32 %v200, %v204
    %v207 = vmul.f32 %v201, %v205
    %v208 = vsel %vm198, 0.0, %v206
    %v209 = vsel %vm199, 0.0, %v207
    %v210 = vstv %s191
    %v211 = vmul.f32 %v210, %v208
    %v212 = vmul.f32 %v210, %v209
    %v213 = vadd.f32 %v177, %v211
    %v214 = vadd.f32 %v178, %v212
    %v215 = vstv %s192
    %v216 = vmul.f32 %v215, %v208
    %v217 = vmul.f32 %v215, %v209
    %v218 = vadd.f32 %v182, %v216
    %v219 = vadd.f32 %v183, %v217
    %v220 = vstv %s190
    %v221 = vsel %vm198, %v220, %v185
    %v222 = vsel %vm199, %v220, %v186
    %vm223 = vmor %vm187, %vm198
    %vm224 = vmor %vm188, %vm199
    %s225 = sld [smem:[#allocation2 + $0x4]]
    %s226 = sld [smem:[#allocation7 + $0x4]]
    %s227 = sld [smem:[#allocation8 + $0x4]]
    %s228 = sld [smem:[#allocation10 + $0x4]]
    %v229 = vstv %s225
    %v230 = vsub.f32 %v81, %v229
    %v231 = vsub.f32 %v82, %v229
    %v232 = vand.u32 2147483647, %v230
    %v233 = vand.u32 2147483647, %v231
    %vm234 = vcmp.lt.f32.partialorder %v232, 1e-14
    %vm235 = vcmp.lt.f32.partialorder %v233, 1e-14
    %v236 = vrcp.pop %v230
    %v237 = vrcp.pop %v231
    %v238 = vmul.f32 %v230, %v236
    %v239 = vmul.f32 %v231, %v237
    %v240 = vsub.f32 2.0, %v238
    %v241 = vsub.f32 2.0, %v239
    %v242 = vmul.f32 %v236, %v240
    %v243 = vmul.f32 %v237, %v241
    %v244 = vsel %vm234, 0.0, %v242
    %v245 = vsel %vm235, 0.0, %v243
    %v246 = vstv %s227
    %v247 = vmul.f32 %v246, %v244
    %v248 = vmul.f32 %v246, %v245
    %v249 = vadd.f32 %v213, %v247
    %v250 = vadd.f32 %v214, %v248
    %v251 = vstv %s228
    %v252 = vmul.f32 %v251, %v244
    %v253 = vmul.f32 %v251, %v245
    %v254 = vadd.f32 %v218, %v252
    %v255 = vadd.f32 %v219, %v253
    %v256 = vstv %s226
    %v257 = vsel %vm234, %v256, %v221
    %v258 = vsel %vm235, %v256, %v222
    %vm259 = vmor %vm223, %vm234
    %vm260 = vmor %vm224, %vm235
    %s261 = sld [smem:[#allocation2 + $0x5]]
    %s262 = sld [smem:[#allocation7 + $0x5]]
    %s263 = sld [smem:[#allocation8 + $0x5]]
    %s264 = sld [smem:[#allocation10 + $0x5]]
    %v265 = vstv %s261
    %v266 = vsub.f32 %v81, %v265
    %v267 = vsub.f32 %v82, %v265
    %v268 = vand.u32 2147483647, %v266
    %v269 = vand.u32 2147483647, %v267
    %vm270 = vcmp.lt.f32.partialorder %v268, 1e-14
    %vm271 = vcmp.lt.f32.partialorder %v269, 1e-14
    %v272 = vrcp.pop %v266
    %v273 = vrcp.pop %v267
    %v274 = vmul.f32 %v266, %v272
    %v275 = vmul.f32 %v267, %v273
    %v276 = vsub.f32 2.0, %v274
    %v277 = vsub.f32 2.0, %v275
    %v278 = vmul.f32 %v272, %v276
    %v279 = vmul.f32 %v273, %v277
    %v280 = vsel %vm270, 0.0, %v278
    %v281 = vsel %vm271, 0.0, %v279
    %v282 = vstv %s263
    %v283 = vmul.f32 %v282, %v280
    %v284 = vmul.f32 %v282, %v281
    %v285 = vadd.f32 %v249, %v283
    %v286 = vadd.f32 %v250, %v284
    %v287 = vstv %s264
    %v288 = vmul.f32 %v287, %v280
    %v289 = vmul.f32 %v287, %v281
    %v290 = vadd.f32 %v254, %v288
    %v291 = vadd.f32 %v255, %v289
    %v292 = vstv %s262
    %v293 = vsel %vm270, %v292, %v257
    %v294 = vsel %vm271, %v292, %v258
    %vm295 = vmor %vm259, %vm270
    %vm296 = vmor %vm260, %vm271
    %s297 = sld [smem:[#allocation2 + $0x6]]
    %s298 = sld [smem:[#allocation7 + $0x6]]
    %s299 = sld [smem:[#allocation8 + $0x6]]
    %s300 = sld [smem:[#allocation10 + $0x6]]
    %v301 = vstv %s297
    %v302 = vsub.f32 %v81, %v301
    %v303 = vsub.f32 %v82, %v301
    %v304 = vand.u32 2147483647, %v302
    %v305 = vand.u32 2147483647, %v303
    %vm306 = vcmp.lt.f32.partialorder %v304, 1e-14
    %vm307 = vcmp.lt.f32.partialorder %v305, 1e-14
    %v308 = vrcp.pop %v302
    %v309 = vrcp.pop %v303
    %v310 = vmul.f32 %v302, %v308
    %v311 = vmul.f32 %v303, %v309
    %v312 = vsub.f32 2.0, %v310
    %v313 = vsub.f32 2.0, %v311
    %v314 = vmul.f32 %v308, %v312
    %v315 = vmul.f32 %v309, %v313
    %v316 = vsel %vm306, 0.0, %v314
    %v317 = vsel %vm307, 0.0, %v315
    %v318 = vstv %s299
    %v319 = vmul.f32 %v318, %v316
    %v320 = vmul.f32 %v318, %v317
    %v321 = vadd.f32 %v285, %v319
    %v322 = vadd.f32 %v286, %v320
    %v323 = vstv %s300
    %v324 = vmul.f32 %v323, %v316
    %v325 = vmul.f32 %v323, %v317
    %v326 = vadd.f32 %v290, %v324
    %v327 = vadd.f32 %v291, %v325
    %v328 = vstv %s298
    %v329 = vsel %vm306, %v328, %v293
    %v330 = vsel %vm307, %v328, %v294
    %vm331 = vmor %vm295, %vm306
    %vm332 = vmor %vm296, %vm307
    %s333 = sld [smem:[#allocation2 + $0x7]]
    %s334 = sld [smem:[#allocation7 + $0x7]]
    %s335 = sld [smem:[#allocation8 + $0x7]]
    %s336 = sld [smem:[#allocation10 + $0x7]]
    %v337 = vstv %s333
    %v338 = vsub.f32 %v81, %v337
    %v339 = vsub.f32 %v82, %v337
    %v340 = vand.u32 2147483647, %v338
    %v341 = vand.u32 2147483647, %v339
    %vm342 = vcmp.lt.f32.partialorder %v340, 1e-14
    %vm343 = vcmp.lt.f32.partialorder %v341, 1e-14
    %v344 = vrcp.pop %v338
    %v345 = vrcp.pop %v339
    %v346 = vmul.f32 %v338, %v344
    %v347 = vmul.f32 %v339, %v345
    %v348 = vsub.f32 2.0, %v346
    %v349 = vsub.f32 2.0, %v347
    %v350 = vmul.f32 %v344, %v348
    %v351 = vmul.f32 %v345, %v349
    %v352 = vsel %vm342, 0.0, %v350
    %v353 = vsel %vm343, 0.0, %v351
    %v354 = vstv %s335
    %v355 = vmul.f32 %v354, %v352
    %v356 = vmul.f32 %v354, %v353
    %v357 = vadd.f32 %v321, %v355
    %v358 = vadd.f32 %v322, %v356
    %v359 = vstv %s336
    %v360 = vmul.f32 %v359, %v352
    %v361 = vmul.f32 %v359, %v353
    %v362 = vadd.f32 %v326, %v360
    %v363 = vadd.f32 %v327, %v361
    %v364 = vstv %s334
    %v365 = vsel %vm342, %v364, %v329
    %v366 = vsel %vm343, %v364, %v330
    %vm367 = vmor %vm331, %vm342
    %vm368 = vmor %vm332, %vm343
    %s369 = sld [smem:[#allocation2 + $0x8]]
    %s370 = sld [smem:[#allocation7 + $0x8]]
    %s371 = sld [smem:[#allocation8 + $0x8]]
    %s372 = sld [smem:[#allocation10 + $0x8]]
    %v373 = vstv %s369
    %v374 = vsub.f32 %v81, %v373
    %v375 = vsub.f32 %v82, %v373
    %v376 = vand.u32 2147483647, %v374
    %v377 = vand.u32 2147483647, %v375
    %vm378 = vcmp.lt.f32.partialorder %v376, 1e-14
    %vm379 = vcmp.lt.f32.partialorder %v377, 1e-14
    %v380 = vrcp.pop %v374
    %v381 = vrcp.pop %v375
    %v382 = vmul.f32 %v374, %v380
    %v383 = vmul.f32 %v375, %v381
    %v384 = vsub.f32 2.0, %v382
    %v385 = vsub.f32 2.0, %v383
    %v386 = vmul.f32 %v380, %v384
    %v387 = vmul.f32 %v381, %v385
    %v388 = vsel %vm378, 0.0, %v386
    %v389 = vsel %vm379, 0.0, %v387
    %v390 = vstv %s371
    %v391 = vmul.f32 %v390, %v388
    %v392 = vmul.f32 %v390, %v389
    %v393 = vadd.f32 %v357, %v391
    %v394 = vadd.f32 %v358, %v392
    %v395 = vstv %s372
    %v396 = vmul.f32 %v395, %v388
    %v397 = vmul.f32 %v395, %v389
    %v398 = vadd.f32 %v362, %v396
    %v399 = vadd.f32 %v363, %v397
    %v400 = vstv %s370
    %v401 = vsel %vm378, %v400, %v365
    %v402 = vsel %vm379, %v400, %v366
    %vm403 = vmor %vm367, %vm378
    %vm404 = vmor %vm368, %vm379
    %s405 = sld [smem:[#allocation2 + $0x9]]
    %s406 = sld [smem:[#allocation7 + $0x9]]
    %s407 = sld [smem:[#allocation8 + $0x9]]
    %s408 = sld [smem:[#allocation10 + $0x9]]
    %v409 = vstv %s405
    %v410 = vsub.f32 %v81, %v409
    %v411 = vsub.f32 %v82, %v409
    %v412 = vand.u32 2147483647, %v410
    %v413 = vand.u32 2147483647, %v411
    %vm414 = vcmp.lt.f32.partialorder %v412, 1e-14
    %vm415 = vcmp.lt.f32.partialorder %v413, 1e-14
    %v416 = vrcp.pop %v410
    %v417 = vrcp.pop %v411
    %v418 = vmul.f32 %v410, %v416
    %v419 = vmul.f32 %v411, %v417
    %v420 = vsub.f32 2.0, %v418
    %v421 = vsub.f32 2.0, %v419
    %v422 = vmul.f32 %v416, %v420
    %v423 = vmul.f32 %v417, %v421
    %v424 = vsel %vm414, 0.0, %v422
    %v425 = vsel %vm415, 0.0, %v423
    %v426 = vstv %s407
    %v427 = vmul.f32 %v426, %v424
    %v428 = vmul.f32 %v426, %v425
    %v429 = vadd.f32 %v393, %v427
    %v430 = vadd.f32 %v394, %v428
    %v431 = vstv %s408
    %v432 = vmul.f32 %v431, %v424
    %v433 = vmul.f32 %v431, %v425
    %v434 = vadd.f32 %v398, %v432
    %v435 = vadd.f32 %v399, %v433
    %v436 = vstv %s406
    %v437 = vsel %vm414, %v436, %v401
    %v438 = vsel %vm415, %v436, %v402
    %vm439 = vmor %vm403, %vm414
    %vm440 = vmor %vm404, %vm415
    %s441 = sld [smem:[#allocation2 + $0xa]]
    %s442 = sld [smem:[#allocation7 + $0xa]]
    %s443 = sld [smem:[#allocation8 + $0xa]]
    %s444 = sld [smem:[#allocation10 + $0xa]]
    %v445 = vstv %s441
    %v446 = vsub.f32 %v81, %v445
    %v447 = vsub.f32 %v82, %v445
    %v448 = vand.u32 2147483647, %v446
    %v449 = vand.u32 2147483647, %v447
    %vm450 = vcmp.lt.f32.partialorder %v448, 1e-14
    %vm451 = vcmp.lt.f32.partialorder %v449, 1e-14
    %v452 = vrcp.pop %v446
    %v453 = vrcp.pop %v447
    %v454 = vmul.f32 %v446, %v452
    %v455 = vmul.f32 %v447, %v453
    %v456 = vsub.f32 2.0, %v454
    %v457 = vsub.f32 2.0, %v455
    %v458 = vmul.f32 %v452, %v456
    %v459 = vmul.f32 %v453, %v457
    %v460 = vsel %vm450, 0.0, %v458
    %v461 = vsel %vm451, 0.0, %v459
    %v462 = vstv %s443
    %v463 = vmul.f32 %v462, %v460
    %v464 = vmul.f32 %v462, %v461
    %v465 = vadd.f32 %v429, %v463
    %v466 = vadd.f32 %v430, %v464
    %v467 = vstv %s444
    %v468 = vmul.f32 %v467, %v460
    %v469 = vmul.f32 %v467, %v461
    %v470 = vadd.f32 %v434, %v468
    %v471 = vadd.f32 %v435, %v469
    %v472 = vstv %s442
    %v473 = vsel %vm450, %v472, %v437
    %v474 = vsel %vm451, %v472, %v438
    %vm475 = vmor %vm439, %vm450
    %vm476 = vmor %vm440, %vm451
    %s477 = sld [smem:[#allocation2 + $0xb]]
    %s478 = sld [smem:[#allocation7 + $0xb]]
    %s479 = sld [smem:[#allocation8 + $0xb]]
    %s480 = sld [smem:[#allocation10 + $0xb]]
    %v481 = vstv %s477
    %v482 = vsub.f32 %v81, %v481
    %v483 = vsub.f32 %v82, %v481
    %v484 = vand.u32 2147483647, %v482
    %v485 = vand.u32 2147483647, %v483
    %vm486 = vcmp.lt.f32.partialorder %v484, 1e-14
    %vm487 = vcmp.lt.f32.partialorder %v485, 1e-14
    %v488 = vrcp.pop %v482
    %v489 = vrcp.pop %v483
    %v490 = vmul.f32 %v482, %v488
    %v491 = vmul.f32 %v483, %v489
    %v492 = vsub.f32 2.0, %v490
    %v493 = vsub.f32 2.0, %v491
    %v494 = vmul.f32 %v488, %v492
    %v495 = vmul.f32 %v489, %v493
    %v496 = vsel %vm486, 0.0, %v494
    %v497 = vsel %vm487, 0.0, %v495
    %v498 = vstv %s479
    %v499 = vmul.f32 %v498, %v496
    %v500 = vmul.f32 %v498, %v497
    %v501 = vadd.f32 %v465, %v499
    %v502 = vadd.f32 %v466, %v500
    %v503 = vstv %s480
    %v504 = vmul.f32 %v503, %v496
    %v505 = vmul.f32 %v503, %v497
    %v506 = vadd.f32 %v470, %v504
    %v507 = vadd.f32 %v471, %v505
    %v508 = vstv %s478
    %v509 = vsel %vm486, %v508, %v473
    %v510 = vsel %vm487, %v508, %v474
    %vm511 = vmor %vm475, %vm486
    %vm512 = vmor %vm476, %vm487
    %s513 = sld [smem:[#allocation2 + $0xc]]
    %s514 = sld [smem:[#allocation7 + $0xc]]
    %s515 = sld [smem:[#allocation8 + $0xc]]
    %s516 = sld [smem:[#allocation10 + $0xc]]
    %v517 = vstv %s513
    %v518 = vsub.f32 %v81, %v517
    %v519 = vsub.f32 %v82, %v517
    %v520 = vand.u32 2147483647, %v518
    %v521 = vand.u32 2147483647, %v519
    %vm522 = vcmp.lt.f32.partialorder %v520, 1e-14
    %vm523 = vcmp.lt.f32.partialorder %v521, 1e-14
    %v524 = vrcp.pop %v518
    %v525 = vrcp.pop %v519
    %v526 = vmul.f32 %v518, %v524
    %v527 = vmul.f32 %v519, %v525
    %v528 = vsub.f32 2.0, %v526
    %v529 = vsub.f32 2.0, %v527
    %v530 = vmul.f32 %v524, %v528
    %v531 = vmul.f32 %v525, %v529
    %v532 = vsel %vm522, 0.0, %v530
    %v533 = vsel %vm523, 0.0, %v531
    %v534 = vstv %s515
    %v535 = vmul.f32 %v534, %v532
    %v536 = vmul.f32 %v534, %v533
    %v537 = vadd.f32 %v501, %v535
    %v538 = vadd.f32 %v502, %v536
    %v539 = vstv %s516
    %v540 = vmul.f32 %v539, %v532
    %v541 = vmul.f32 %v539, %v533
    %v542 = vadd.f32 %v506, %v540
    %v543 = vadd.f32 %v507, %v541
    %v544 = vstv %s514
    %v545 = vsel %vm522, %v544, %v509
    %v546 = vsel %vm523, %v544, %v510
    %vm547 = vmor %vm511, %vm522
    %vm548 = vmor %vm512, %vm523
    %s549 = sld [smem:[#allocation2 + $0xd]]
    %s550 = sld [smem:[#allocation7 + $0xd]]
    %s551 = sld [smem:[#allocation8 + $0xd]]
    %s552 = sld [smem:[#allocation10 + $0xd]]
    %v553 = vstv %s549
    %v554 = vsub.f32 %v81, %v553
    %v555 = vsub.f32 %v82, %v553
    %v556 = vand.u32 2147483647, %v554
    %v557 = vand.u32 2147483647, %v555
    %vm558 = vcmp.lt.f32.partialorder %v556, 1e-14
    %vm559 = vcmp.lt.f32.partialorder %v557, 1e-14
    %v560 = vrcp.pop %v554
    %v561 = vrcp.pop %v555
    %v562 = vmul.f32 %v554, %v560
    %v563 = vmul.f32 %v555, %v561
    %v564 = vsub.f32 2.0, %v562
    %v565 = vsub.f32 2.0, %v563
    %v566 = vmul.f32 %v560, %v564
    %v567 = vmul.f32 %v561, %v565
    %v568 = vsel %vm558, 0.0, %v566
    %v569 = vsel %vm559, 0.0, %v567
    %v570 = vstv %s551
    %v571 = vmul.f32 %v570, %v568
    %v572 = vmul.f32 %v570, %v569
    %v573 = vadd.f32 %v537, %v571
    %v574 = vadd.f32 %v538, %v572
    %v575 = vstv %s552
    %v576 = vmul.f32 %v575, %v568
    %v577 = vmul.f32 %v575, %v569
    %v578 = vadd.f32 %v542, %v576
    %v579 = vadd.f32 %v543, %v577
    %v580 = vstv %s550
    %v581 = vsel %vm558, %v580, %v545
    %v582 = vsel %vm559, %v580, %v546
    %vm583 = vmor %vm547, %vm558
    %vm584 = vmor %vm548, %vm559
    %s585 = sld [smem:[#allocation2 + $0xe]]
    %s586 = sld [smem:[#allocation7 + $0xe]]
    %s587 = sld [smem:[#allocation8 + $0xe]]
    %s588 = sld [smem:[#allocation10 + $0xe]]
    %v589 = vstv %s585
    %v590 = vsub.f32 %v81, %v589
    %v591 = vsub.f32 %v82, %v589
    %v592 = vand.u32 2147483647, %v590
    %v593 = vand.u32 2147483647, %v591
    %vm594 = vcmp.lt.f32.partialorder %v592, 1e-14
    %vm595 = vcmp.lt.f32.partialorder %v593, 1e-14
    %v596 = vrcp.pop %v590
    %v597 = vrcp.pop %v591
    %v598 = vmul.f32 %v590, %v596
    %v599 = vmul.f32 %v591, %v597
    %v600 = vsub.f32 2.0, %v598
    %v601 = vsub.f32 2.0, %v599
    %v602 = vmul.f32 %v596, %v600
    %v603 = vmul.f32 %v597, %v601
    %v604 = vsel %vm594, 0.0, %v602
    %v605 = vsel %vm595, 0.0, %v603
    %v606 = vstv %s587
    %v607 = vmul.f32 %v606, %v604
    %v608 = vmul.f32 %v606, %v605
    %v609 = vadd.f32 %v573, %v607
    %v610 = vadd.f32 %v574, %v608
    %v611 = vstv %s588
    %v612 = vmul.f32 %v611, %v604
    %v613 = vmul.f32 %v611, %v605
    %v614 = vadd.f32 %v578, %v612
    %v615 = vadd.f32 %v579, %v613
    %v616 = vstv %s586
    %v617 = vsel %vm594, %v616, %v581
    %v618 = vsel %vm595, %v616, %v582
    %vm619 = vmor %vm583, %vm594
    %vm620 = vmor %vm584, %vm595
    %s621 = sld [smem:[#allocation2 + $0xf]]
    %s622 = sld [smem:[#allocation7 + $0xf]]
    %s623 = sld [smem:[#allocation8 + $0xf]]
    %s624 = sld [smem:[#allocation10 + $0xf]]
    %v625 = vstv %s621
    %v626 = vsub.f32 %v81, %v625
    %v627 = vsub.f32 %v82, %v625
    %v628 = vand.u32 2147483647, %v626
    %v629 = vand.u32 2147483647, %v627
    %vm630 = vcmp.lt.f32.partialorder %v628, 1e-14
    %vm631 = vcmp.lt.f32.partialorder %v629, 1e-14
    %v632 = vrcp.pop %v626
    %v633 = vrcp.pop %v627
    %v634 = vmul.f32 %v626, %v632
    %v635 = vmul.f32 %v627, %v633
    %v636 = vsub.f32 2.0, %v634
    %v637 = vsub.f32 2.0, %v635
    %v638 = vmul.f32 %v632, %v636
    %v639 = vmul.f32 %v633, %v637
    %v640 = vsel %vm630, 0.0, %v638
    %v641 = vsel %vm631, 0.0, %v639
    %v642 = vstv %s623
    %v643 = vmul.f32 %v642, %v640
    %v644 = vmul.f32 %v642, %v641
    %v645 = vadd.f32 %v609, %v643
    %v646 = vadd.f32 %v610, %v644
    %v647 = vstv %s624
    %v648 = vmul.f32 %v647, %v640
    %v649 = vmul.f32 %v647, %v641
    %v650 = vadd.f32 %v614, %v648
    %v651 = vadd.f32 %v615, %v649
    %v652 = vstv %s622
    %v653 = vsel %vm630, %v652, %v617
    %v654 = vsel %vm631, %v652, %v618
    %vm655 = vmor %vm619, %vm630
    %vm656 = vmor %vm620, %vm631
    %v657 = vrcp.pop %v650
    %v658 = vmul.f32 %v645, %v657
    %v659 = vrcp.pop %v651
    %v660 = vmul.f32 %v646, %v659
    %v661 = vsel %vm655, %v653, %v658
    %v662 = vsel %vm656, %v654, %v660
    %663 = vst [vmem:[#allocation12] sm:$0xff] %v661
    %664 = vst [vmem:[#allocation12 + $0x8] sm:$0xff] %v662
    // Predicated region
    $region42: #{tpu_custom_call.1} parent=1 // pred_check
      _
    $region43: #{tpu_custom_call.1} parent=1 // pred_check_branch
      %666 = sbr.rel (0) target = $region45
    $region44: #{tpu_custom_call.1} parent=1 // pred_region
      %s668 = ssub.s32 256, 256
      %669 = vsyncadd [#allocation4], %s668
      %s670 = sshll.u32 [#allocation12], 4
      %s671 = int_to_ptr.vmem [resolvable:$true] %s670
      %676 = dma.vmem_to_hbm [thread:$0]  %s671, 256, %s5, [#allocation4], 128, 128, 8
    $region45: #{tpu_custom_call.1} parent=1 // pred_fallthru
      _
    // Predicated region
    $region46: #{tpu_custom_call.1} parent=1 // pred_check
      _
    $region47: #{tpu_custom_call.1} parent=1 // pred_check_branch
      %678 = sbr.rel (0) target = $region49
    $region48: #{tpu_custom_call.1} parent=1 // pred_region
      %679 = dma.done [#allocation4], 256
    $region49: #{tpu_custom_call.1} parent=1 // pred_fallthru
      _
    %680 = vsyncpa [#allocation3], 1
    %681 = vsyncpa [#allocation4], 1
    %682 = vsyncpa [#allocation5], 1
    %683 = vsyncpa [#allocation6], 1
    %684 = vsyncpa [#allocation9], 1

</llo_original>
